<compile_context>
chip_gen: v6e
topology: v6e:2x2x1
jax: 0.10.0
libtpu: 0.0.40
codegen_flags: <defaults>
</compile_context>

<pallas_src>
import jax
import jax.numpy as jnp
from jax.experimental import pallas as pl
from jax.experimental.pallas import tpu as pltpu


def _round_up(n: int, m: int) -> int:
    return ((n + m - 1) // m) * m


def _decode_kernel(x_ref, pos_ref, w_ref, e_ref, out_ref):
    """x: (T, 3*vdim), pos: (T, 3), w: (3*vdim, 3*natom), e: (3, 3*natom)."""
    acc = jnp.dot(x_ref[...], w_ref[...], preferred_element_type=jnp.float32)
    acc = acc + jnp.dot(pos_ref[...], e_ref[...], preferred_element_type=jnp.float32)
    out_ref[...] = acc.astype(out_ref.dtype)


def _resident_spec(block_shape):
    """Constant-index (weight) block that stays resident across the grid.
    Single-buffer it when this JAX version supports pipeline_mode (reclaims
    VMEM when vdim*natom is large); otherwise use the default double buffer."""
    index_map = lambda i: (0,) * len(block_shape)
    if hasattr(pl, "Buffered"):
        try:
            return pl.BlockSpec(block_shape, index_map, pipeline_mode=pl.Buffered(1))
        except TypeError:
            pass
    return pl.BlockSpec(block_shape, index_map)


def single_residue_decode(pos_ca, x_v, weights, *, tile_b=8192,
                          vmem_stream_budget=24 << 20):
    """pos_ca: (B, 3), x_v: (B, vdim, 3), weights: list of (out_k, in_k) arrays.

    Returns (B, natom, 3) == pos_ca[:, None] + chain-of-VecLinear(x_v)."""
    batch, vdim, three = x_v.shape
    assert three == 3
    natom = weights[-1].shape[0]
    kdim, ndim = 3 * vdim, 3 * natom

    # ---- collapse the bias-free linear chain (no nonlinearity in between) ---
    w_eff = weights[0].astype(jnp.float32)
    for w in weights[1:]:
        w_eff = jnp.dot(w.astype(jnp.float32), w_eff)       # (natom, vdim)

    # kron-expand so the kernel works directly on the row-major (B, 3*vdim)
    # view of x_v -- no wrapper-side transpose (that would be a full HBM pass).
    eye3 = jnp.eye(3, dtype=jnp.float32)
    w_kron = jnp.kron(w_eff.T, eye3)                         # (3*vdim, 3*natom)
    e_mat = jnp.tile(eye3, (1, natom))                       # (3, 3*natom)
    # TODO(synk): if the producer could append pos_ca as one extra vector
    # channel (x_aug: (B, vdim+1, 3)), fold e_mat into w_kron's last 3 rows and
    # drop the pos stream + second dot (removes one lane-padded DMA stream).

    x_flat = x_v.reshape(batch, kdim)                        # free view
    # TODO(synk): stream x/out in bf16 when the producer already emits bf16
    # (halves HBM traffic); dots accumulate in f32 so accuracy is preserved.

    x_item = jnp.dtype(x_v.dtype).itemsize
    pos_item = jnp.dtype(pos_ca.dtype).itemsize
    out_item = x_item

    # ---- tile selection: biggest tile within the VMEM stream budget ---------
    # Per-row double-buffered VMEM bytes; the narrow pos/out blocks are padded
    # to 128 lanes in VMEM, so that padding is budgeted explicitly.
    stream_row_bytes = 2 * (_round_up(kdim, 128) * x_item
                            + 128 * pos_item
                            + _round_up(ndim, 128) * out_item)
    # Resident weights (budgeted double-buffered = worst case).
    weight_bytes = 2 * (_round_up(kdim, 8) * _round_up(ndim, 128) * 4
                        + 8 * _round_up(ndim, 128) * 4)

    tile = max(8, min(tile_b, vmem_stream_budget // stream_row_bytes) // 8 * 8)
    if batch >= 16:
        # At least two grid steps so both v7x TensorCores get work.
        tile = min(tile, _round_up(-(-batch // 2), 8))
    tile = min(tile, _round_up(batch, 8))
    grid = (pl.cdiv(batch, tile),)

    vmem_limit = min(
        max(32 << 20, tile * stream_row_bytes + weight_bytes + (4 << 20)),
        64 << 20)

    flops = 2 * batch * kdim * ndim + 2 * batch * 3 * ndim
    bytes_accessed = (batch * (kdim * x_item + 3 * pos_item + ndim * out_item)
                      + (kdim + 3) * ndim * 4)
    cost = pl.CostEstimate(flops=flops, transcendentals=0,
                           bytes_accessed=bytes_accessed)

    out_flat = pl.pallas_call(
        _decode_kernel,
        out_shape=jax.ShapeDtypeStruct((batch, ndim), x_v.dtype),
        grid=grid,
        in_specs=[
            pl.BlockSpec((tile, kdim), lambda i: (i, 0)),    # streamed x view
            pl.BlockSpec((tile, 3), lambda i: (i, 0)),       # streamed pos
            _resident_spec((kdim, ndim)),                    # resident kron weight
            _resident_spec((3, ndim)),                       # resident eye-tile
        ],
        out_specs=pl.BlockSpec((tile, ndim), lambda i: (i, 0)),
        compiler_params=pltpu.CompilerParams(
            dimension_semantics=("parallel",),               # megacore / v7x TC sharding
            vmem_limit_bytes=vmem_limit),
        cost_estimate=cost,
    )(x_flat, pos_ca, w_kron, e_mat)

    return out_flat.reshape(batch, natom, 3)                 # free view back


def _reference(pos_ca, x_v, weights):
    h = x_v
    for w in weights:
        h = jnp.einsum("oi,bid->bod", w, h)
    return pos_ca[:, None] + h


if __name__ == "__main__":
    # Small, module-consistent shapes.
    batch, vdim, natom, nlin = 8, 32, 16, 2

    key = jax.random.PRNGKey(0)
    k_pos, k_xv, k_w0, k_w1 = jax.random.split(key, 4)

    pos_ca = jax.random.normal(k_pos, (batch, 3), dtype=jnp.float32)
    x_v = jax.random.normal(k_xv, (batch, vdim, 3), dtype=jnp.float32)

    # Synthetic VecLinear weights: VecLinear(vdim, vdim), VecLinear(vdim, natom)
    w0 = jax.random.normal(k_w0, (vdim, vdim), dtype=jnp.float32) / jnp.sqrt(vdim)
    w1 = jax.random.normal(k_w1, (natom, vdim), dtype=jnp.float32) / jnp.sqrt(vdim)
    weights = [w0, w1]
    assert len(weights) == nlin

    out = jax.block_until_ready(single_residue_decode(pos_ca, x_v, weights))

    ref = _reference(pos_ca, x_v, weights)
    assert out.shape == (batch, natom, 3)
    assert jnp.allclose(out, ref, atol=1e-3, rtol=1e-3)
    print("KERNEL_OK")
</pallas_src>

<mosaic_0001>
module attributes {stable_mosaic.version = 11 : i64} {
  func.func @_decode_kernel(%arg0: i32, %arg1: memref<8x96xf32, #tpu.memory_space<vmem>>, %arg2: memref<8x3xf32, #tpu.memory_space<vmem>>, %arg3: memref<96x48xf32, #tpu.memory_space<vmem>>, %arg4: memref<3x48xf32, #tpu.memory_space<vmem>>, %arg5: memref<8x48xf32, #tpu.memory_space<vmem>>) attributes {dimension_semantics = [#tpu.dimension_semantics<parallel>], iteration_bounds = array<i64: 1>, scalar_prefetch = 0 : i64, scratch_operands = 0 : i64, tpu.core_type = #tpu.core_type<tc>, window_params = [{transform_indices = @transform_0, window_bounds = array<i64: 8, 96>}, {transform_indices = @transform_1, window_bounds = array<i64: 8, 3>}, {pipeline_mode = #tpu.pipeline_mode<synchronous>, transform_indices = @transform_2, window_bounds = array<i64: 96, 48>}, {pipeline_mode = #tpu.pipeline_mode<synchronous>, transform_indices = @transform_3, window_bounds = array<i64: 3, 48>}, {transform_indices = @transform_4, window_bounds = array<i64: 8, 48>}]} {
    %c0 = arith.constant 0 : index
    %c0_0 = arith.constant 0 : index
    %0 = vector.load %arg1[%c0, %c0_0] : memref<8x96xf32, #tpu.memory_space<vmem>>, vector<8x96xf32>
    %c0_1 = arith.constant 0 : index
    %c0_2 = arith.constant 0 : index
    %1 = vector.load %arg3[%c0_1, %c0_2] : memref<96x48xf32, #tpu.memory_space<vmem>>, vector<96x48xf32>
    %cst = arith.constant dense<0.000000e+00> : vector<8x48xf32>
    %2 = tpu.matmul %0, %1, %cst {dimension_numbers = #tpu.dot_dimension_numbers<[1], [0], [0], [1], [0, 0, 1, 1], [], []>} : vector<8x96xf32>, vector<96x48xf32>, vector<8x48xf32> -> vector<8x48xf32>
    %c0_3 = arith.constant 0 : index
    %c0_4 = arith.constant 0 : index
    %3 = vector.load %arg2[%c0_3, %c0_4] : memref<8x3xf32, #tpu.memory_space<vmem>>, vector<8x3xf32>
    %c0_5 = arith.constant 0 : index
    %c0_6 = arith.constant 0 : index
    %4 = vector.load %arg4[%c0_5, %c0_6] : memref<3x48xf32, #tpu.memory_space<vmem>>, vector<3x48xf32>
    %cst_7 = arith.constant dense<0.000000e+00> : vector<8x48xf32>
    %5 = tpu.matmul %3, %4, %cst_7 {dimension_numbers = #tpu.dot_dimension_numbers<[1], [0], [0], [1], [0, 0, 1, 1], [], []>} : vector<8x3xf32>, vector<3x48xf32>, vector<8x48xf32> -> vector<8x48xf32>
    %6 = arith.addf %2, %5 : vector<8x48xf32>
    %c0_8 = arith.constant 0 : index
    %c0_9 = arith.constant 0 : index
    %7 = vector.load %arg5[%c0_8, %c0_9] : memref<8x48xf32, #tpu.memory_space<vmem>>, vector<8x48xf32>
    tpu.vector_store %arg5[%c0_8, %c0_9], %6 {strides = array<i32>} : memref<8x48xf32, #tpu.memory_space<vmem>>, vector<8x48xf32>,
    return
  }
  func.func @transform_0(%arg0: i32) -> (i32, i32) {
    %c0_i32 = arith.constant 0 : i32
    %c0_i32_0 = arith.constant 0 : i32
    return %arg0, %c0_i32 : i32, i32
  }
  func.func @transform_1(%arg0: i32) -> (i32, i32) {
    %c0_i32 = arith.constant 0 : i32
    %c0_i32_0 = arith.constant 0 : i32
    return %arg0, %c0_i32 : i32, i32
  }
  func.func @transform_2(%arg0: i32) -> (i32, i32) {
    %c0_i32 = arith.constant 0 : i32
    %c0_i32_0 = arith.constant 0 : i32
    %c0_i32_1 = arith.constant 0 : i32
    return %c0_i32, %c0_i32_0 : i32, i32
  }
  func.func @transform_3(%arg0: i32) -> (i32, i32) {
    %c0_i32 = arith.constant 0 : i32
    %c0_i32_0 = arith.constant 0 : i32
    %c0_i32_1 = arith.constant 0 : i32
    return %c0_i32, %c0_i32_0 : i32, i32
  }
  func.func @transform_4(%arg0: i32) -> (i32, i32) {
    %c0_i32 = arith.constant 0 : i32
    %c0_i32_0 = arith.constant 0 : i32
    return %arg0, %c0_i32 : i32, i32
  }
}

</mosaic_0001>

<llo_original>
// kernel: tpu_custom_call.1
$region0: #{tpu_custom_call.1}
  #allocation0 [shape = 'u32[]', space=smem, size = 0x4, offset = 0x4, fixed_abs, tag = 'smem constant byte address 0x4 - core index']
  #allocation1 [shape = 'u32[144,128]{1,0:T(1,128)}', space=vmem, size = 0x12000, scoped, tag = 'internal scratch']
  %s0 = inlined_call_operand.vmem [shape: f32[8,96], index: 0, kind: input, shape index: {}]
  %s1 = inlined_call_operand.vmem [shape: f32[8,3], index: 1, kind: input, shape index: {}]
  %s2 = inlined_call_operand.vmem [shape: f32[96,48], index: 2, kind: input, shape index: {}]
  %s3 = inlined_call_operand.vmem [shape: f32[3,48], index: 3, kind: input, shape index: {}]
  %s4 = inlined_call_operand.hbm [shape: f32[8,48], index: 4, kind: output, shape index: {}]
  %s5 = sld [smem:[#allocation0]]
  $region26: #{tpu_custom_call.1} parent=0
    _
  %s7 = ssub.s32 1, %s5
  %s8 = scalar_select 0, %s7, %s5
  $region1: #{tpu_custom_call.1} parent=0
    #allocation2 [shape = 'u8[4096]{0}', space=vmem, size = 0x1000, scoped, tag = 'output window, operand 0, single buffered']
    #allocation3 [shape = 's32[1]{0}', space=sflag, size = 0x4, scoped, tag = 'scoped memory for tpu_custom_call.1']
    %9 = vsyncpa [#allocation3], 0
    // Predicated region
    $region2: #{tpu_custom_call.1} parent=1 // pred_check
      _
    $region3: #{tpu_custom_call.1} parent=1 // pred_check_branch
      %11 = sbr.rel (0) target = $region5
    $region4: #{tpu_custom_call.1} parent=1 // pred_region
      _
    $region5: #{tpu_custom_call.1} parent=1 // pred_fallthru
      _
    // Predicated region
    $region6: #{tpu_custom_call.1} parent=1 // pred_check
      _
    $region7: #{tpu_custom_call.1} parent=1 // pred_check_branch
      %13 = sbr.rel (0) target = $region9
    $region8: #{tpu_custom_call.1} parent=1 // pred_region
      _
    $region9: #{tpu_custom_call.1} parent=1 // pred_fallthru
      _
    // Predicated region
    $region10: #{tpu_custom_call.1} parent=1 // pred_check
      _
    $region11: #{tpu_custom_call.1} parent=1 // pred_check_branch
      %15 = sbr.rel (0) target = $region13
    $region12: #{tpu_custom_call.1} parent=1 // pred_region
      _
    $region13: #{tpu_custom_call.1} parent=1 // pred_fallthru
      _
    // Predicated region
    $region14: #{tpu_custom_call.1} parent=1 // pred_check
      _
    $region15: #{tpu_custom_call.1} parent=1 // pred_check_branch
      %17 = sbr.rel (0) target = $region17
    $region16: #{tpu_custom_call.1} parent=1 // pred_region
      _
    $region17: #{tpu_custom_call.1} parent=1 // pred_fallthru
      _
    %v18 = vld [vmem:[%s0] sm:$0xff]
    %v19 = vld [vmem:[%s2] sm:$0xff]
    %v20 = vld [vmem:[%s2 + $0x8] sm:$0xff]
    %v21 = vld [vmem:[%s2 + $0x10] sm:$0xff]
    %v22 = vld [vmem:[%s2 + $0x18] sm:$0xff]
    %v23 = vld [vmem:[%s2 + $0x20] sm:$0xff]
    %v24 = vld [vmem:[%s2 + $0x28] sm:$0xff]
    %v25 = vld [vmem:[%s2 + $0x30] sm:$0xff]
    %v26 = vld [vmem:[%s2 + $0x38] sm:$0xff]
    %v27 = vld [vmem:[%s2 + $0x40] sm:$0xff]
    %v28 = vld [vmem:[%s2 + $0x48] sm:$0xff]
    %v29 = vld [vmem:[%s2 + $0x50] sm:$0xff]
    %v30 = vld [vmem:[%s2 + $0x58] sm:$0xff]
    %v31 = vld [vmem:[%s1] sm:$0xff]
    %v32 = vld [vmem:[%s3] sm:$0x7]
    %vm33 = vcmask 23552
    %v35 = vsel %vm33, %v31, 0
    %vm37 = vcmask 1042432
    %v39 = vsel %vm37, %v32, 0
    %41 = vmatprep.subr.mxu0 0.0
    %42 = vmatpush1.msra.mxu0 0.0
    %43 = vmatprep.subr.mxu0 0.0
    %44 = vmatpush1.msra.mxu0 0.0
    %45 = vmatprep.subr.mxu0 0.0
    %46 = vmatpush1.msra.mxu0 0.0
    %47 = vmatprep.subr.mxu0 0.0
    %48 = vmatpush1.msra.mxu0 0.0
    %49 = vmatprep.subr.mxu0 0.0
    %50 = vmatpush1.msra.mxu0 0.0
    %51 = vmatprep.subr.mxu0 0.0
    %52 = vmatpush1.msra.mxu0 0.0
    %53 = vmatprep.subr.mxu0 0.0
    %54 = vmatpush1.msra.mxu0 0.0
    %55 = vmatprep.subr.mxu0 0.0
    %56 = vmatpush1.msra.mxu0 0.0
    %57 = vmatprep.subr.mxu0 0.0
    %58 = vmatpush1.msra.mxu0 0.0
    %59 = vmatprep.subr.mxu0 0.0
    %60 = vmatpush1.msra.mxu0 0.0
    %61 = vmatprep.subr.mxu0 0.0
    %62 = vmatpush1.msra.mxu0 0.0
    %63 = vmatprep.subr.mxu0 0.0
    %64 = vmatpush1.msra.mxu0 0.0
    %65 = vmatprep.subr.mxu0 0.0
    %66 = vmatpush1.msra.mxu0 0.0
    %67 = vmatprep.subr.mxu0 0.0
    %68 = vmatpush1.msra.mxu0 0.0
    %69 = vmatprep.subr.mxu0 0.0
    %70 = vmatpush1.msra.mxu0 0.0
    %71 = vmatprep.subr.mxu0 0.0
    %72 = vmatpush1.msra.mxu0 %v39
    %73 = vmatprep.subr.mxu0 0.0
    %74 = vmatpush2.msra.mxu0 0.0
    %75 = vmatprep.subr.mxu0 0.0
    %76 = vmatpush2.msra.mxu0 0.0
    %77 = vmatprep.subr.mxu0 0.0
    %78 = vmatpush2.msra.mxu0 0.0
    %79 = vmatprep.subr.mxu0 0.0
    %80 = vmatpush2.msra.mxu0 0.0
    %81 = vmatprep.subr.mxu0 0.0
    %82 = vmatpush2.msra.mxu0 0.0
    %83 = vmatprep.subr.mxu0 0.0
    %84 = vmatpush2.msra.mxu0 0.0
    %85 = vmatprep.subr.mxu0 0.0
    %86 = vmatpush2.msra.mxu0 0.0
    %87 = vmatprep.subr.mxu0 0.0
    %88 = vmatpush2.msra.mxu0 0.0
    %89 = vmatprep.subr.mxu0 0.0
    %90 = vmatpush2.msra.mxu0 0.0
    %91 = vmatprep.subr.mxu0 0.0
    %92 = vmatpush2.msra.mxu0 0.0
    %93 = vmatprep.subr.mxu0 0.0
    %94 = vmatpush2.msra.mxu0 0.0
    %95 = vmatprep.subr.mxu0 0.0
    %96 = vmatpush2.msra.mxu0 0.0
    %97 = vmatprep.subr.mxu0 0.0
    %98 = vmatpush2.msra.mxu0 0.0
    %99 = vmatprep.subr.mxu0 0.0
    %100 = vmatpush2.msra.mxu0 0.0
    %101 = vmatprep.subr.mxu0 0.0
    %102 = vmatpush2.msra.mxu0 0.0
    %103 = vmatprep.subr.mxu0 0.0
    %104 = vmatpush2.msra.mxu0 0.0
    %105 = vmatprep.mubr.f32.mxu0 0.0
    %106 = vmatmul.mubr.f32.gmra.mxu0 %v35
    %v107 = vpop.f32.mrf.mxu0
    %v108 = vadd.f32 0.0, %v107
    %v109 = vpop.f32.mrf.mxu0
    %110 = vdwg.mxu0
    %vm111 = vcmask 785408
    %v113 = vsel %vm111, %v18, 0
    %115 = vmatprep.subr.mxu0 0.0
    %116 = vmatpush1.msra.mxu0 0.0
    %117 = vmatprep.subr.mxu0 0.0
    %118 = vmatpush1.msra.mxu0 0.0
    %119 = vmatprep.subr.mxu0 0.0
    %120 = vmatpush1.msra.mxu0 0.0
    %121 = vmatprep.subr.mxu0 0.0
    %122 = vmatpush1.msra.mxu0 0.0
    %123 = vmatprep.subr.mxu0 0.0
    %124 = vmatpush1.msra.mxu0 %v30
    %125 = vmatprep.subr.mxu0 0.0
    %126 = vmatpush1.msra.mxu0 %v29
    %127 = vmatprep.subr.mxu0 0.0
    %128 = vmatpush1.msra.mxu0 %v28
    %129 = vmatprep.subr.mxu0 0.0
    %130 = vmatpush1.msra.mxu0 %v27
    %131 = vmatprep.subr.mxu0 0.0
    %132 = vmatpush1.msra.mxu0 %v26
    %133 = vmatprep.subr.mxu0 0.0
    %134 = vmatpush1.msra.mxu0 %v25
    %135 = vmatprep.subr.mxu0 0.0
    %136 = vmatpush1.msra.mxu0 %v24
    %137 = vmatprep.subr.mxu0 0.0
    %138 = vmatpush1.msra.mxu0 %v23
    %139 = vmatprep.subr.mxu0 0.0
    %140 = vmatpush1.msra.mxu0 %v22
    %141 = vmatprep.subr.mxu0 0.0
    %142 = vmatpush1.msra.mxu0 %v21
    %143 = vmatprep.subr.mxu0 0.0
    %144 = vmatpush1.msra.mxu0 %v20
    %145 = vmatprep.subr.mxu0 0.0
    %146 = vmatpush1.msra.mxu0 %v19
    %147 = vmatprep.subr.mxu0 0.0
    %148 = vmatpush2.msra.mxu0 0.0
    %149 = vmatprep.subr.mxu0 0.0
    %150 = vmatpush2.msra.mxu0 0.0
    %151 = vmatprep.subr.mxu0 0.0
    %152 = vmatpush2.msra.mxu0 0.0
    %153 = vmatprep.subr.mxu0 0.0
    %154 = vmatpush2.msra.mxu0 0.0
    %155 = vmatprep.subr.mxu0 0.0
    %156 = vmatpush2.msra.mxu0 0.0
    %157 = vmatprep.subr.mxu0 0.0
    %158 = vmatpush2.msra.mxu0 0.0
    %159 = vmatprep.subr.mxu0 0.0
    %160 = vmatpush2.msra.mxu0 0.0
    %161 = vmatprep.subr.mxu0 0.0
    %162 = vmatpush2.msra.mxu0 0.0
    %163 = vmatprep.subr.mxu0 0.0
    %164 = vmatpush2.msra.mxu0 0.0
    %165 = vmatprep.subr.mxu0 0.0
    %166 = vmatpush2.msra.mxu0 0.0
    %167 = vmatprep.subr.mxu0 0.0
    %168 = vmatpush2.msra.mxu0 0.0
    %169 = vmatprep.subr.mxu0 0.0
    %170 = vmatpush2.msra.mxu0 0.0
    %171 = vmatprep.subr.mxu0 0.0
    %172 = vmatpush2.msra.mxu0 0.0
    %173 = vmatprep.subr.mxu0 0.0
    %174 = vmatpush2.msra.mxu0 0.0
    %175 = vmatprep.subr.mxu0 0.0
    %176 = vmatpush2.msra.mxu0 0.0
    %177 = vmatprep.subr.mxu0 0.0
    %178 = vmatpush2.msra.mxu0 0.0
    %179 = vmatprep.mubr.f32.mxu0 0.0
    %180 = vmatmul.mubr.f32.gmra.mxu0 %v113
    %v181 = vpop.f32.mrf.mxu0
    %v182 = vadd.f32 %v108, %v181
    %v183 = vpop.f32.mrf.mxu0
    %184 = vdwg.mxu0
    %vm185 = vcmask 392192
    %186 = vst.msk [vmem:[#allocation2] sm:$0xff] %vm185, %v182
    // Predicated region
    $region18: #{tpu_custom_call.1} parent=1 // pred_check
      _
    $region19: #{tpu_custom_call.1} parent=1 // pred_check_branch
      %188 = sbr.rel (0) target = $region21
    $region20: #{tpu_custom_call.1} parent=1 // pred_region
      %s190 = ssub.s32 128, 128
      %191 = vsyncadd [#allocation3], %s190
      %s193 = sshll.u32 [#allocation2], 4
      %s194 = int_to_ptr.vmem [resolvable:$true] %s193
      %196 = dma.vmem_to_hbm [thread:$0]  %s194, 128, %s4, [#allocation3]
    $region21: #{tpu_custom_call.1} parent=1 // pred_fallthru
      _
    // Predicated region
    $region22: #{tpu_custom_call.1} parent=1 // pred_check
      _
    $region23: #{tpu_custom_call.1} parent=1 // pred_check_branch
      %198 = sbr.rel (0) target = $region25
    $region24: #{tpu_custom_call.1} parent=1 // pred_region
      %199 = dma.done [#allocation3], 128
    $region25: #{tpu_custom_call.1} parent=1 // pred_fallthru
      _
    %200 = vsyncpa [#allocation3], 1

</llo_original>
